<compile_context>
chip_gen: v5e
topology: v5e:2x2
jax: 0.10.0
libtpu: 0.0.40
codegen_flags: <defaults>
</compile_context>

<pallas_src>
import functools

import jax
import jax.numpy as jnp
from jax.experimental import pallas as pl
from jax.experimental.pallas import tpu as pltpu

HIDDEN = 768        # BERT hidden size
NUM_CLASSES = 2     # nn.Linear(768, 2)
LANES = 128         # lane-dense weight width (MXU-friendly RHS)
MAX_ROW_TILE = 2048 # safe on v5e/v6e/v7x (see VMEM accounting above)


def _round_up(x, m):
    return ((x + m - 1) // m) * m


def _is_v7x():
    """Best-effort chip detection (only used to decide whether splitting a single
    grid step across two TensorCores is worthwhile)."""
    try:
        return "v7" in jax.devices()[0].device_kind.lower()
    except Exception:  # pragma: no cover - conservative fallback
        return False


def _pick_row_tile(M):
    """Big tiles for HBM-bandwidth streaming; cap at MAX_ROW_TILE (fits every
    generation's scoped VMEM with the explicit 28 MiB limit, and stays well under
    v7x's 64 MiB physical per-TC VMEM)."""
    rt = min(MAX_ROW_TILE, _round_up(M, 8))
    if M > rt:
        return rt                      # already >= 2 grid steps
    if _is_v7x() and M > 8:
        # Single step would leave one v7x TensorCore idle; split it in two.
        return max(8, _round_up(pl.cdiv(M, 2), 8))
    return rt


def _cls_softmax_kernel(x_ref, w_ref, b_ref, o_ref, *, compute_dtype):
    """One row-tile.

    w_ref column c (c in {0,1}) holds (w_c - w_{1-c}); pad lanes are zero.
    So d[:, c] = logit_c - logit_{1-c} and sigmoid(d[:, c]) is exactly the 2-class
    softmax probability. Only lanes [0, 2) are written out.
    """
    x = x_ref[...].astype(compute_dtype)
    d = jnp.dot(x, w_ref[...], preferred_element_type=jnp.float32)
    d = d + b_ref[...]                              # (row_tile, 128), f32
    probs = jax.nn.sigmoid(d[:, :NUM_CLASSES])      # (row_tile, 2)
    o_ref[...] = probs.astype(o_ref.dtype)


@functools.partial(jax.jit, static_argnames=("row_tile", "compute_dtype"))
def _cls_softmax_jit(hidden_state, weight, bias, row_tile, compute_dtype):
    B, S, H = hidden_state.shape
    C = weight.shape[0]
    M = B * S
    x2d = hidden_state.reshape(M, H)

    # Lane-dense "difference" weight / bias: column c = (w_c - w_{1-c}), pad lanes 0.
    w_diff = jnp.stack([weight[0] - weight[1], weight[1] - weight[0]], axis=1)  # (H, 2)
    w_pad = jnp.zeros((H, LANES), compute_dtype).at[:, :C].set(
        w_diff.astype(compute_dtype))
    b_diff = jnp.stack([bias[0] - bias[1], bias[1] - bias[0]])
    b_pad = jnp.zeros((1, LANES), jnp.float32).at[0, :C].set(
        b_diff.astype(jnp.float32))

    grid = (pl.cdiv(M, row_tile),)
    out_dtype = hidden_state.dtype
    cost = pl.CostEstimate(
        flops=2 * M * H * C,
        transcendentals=M * C,
        bytes_accessed=(x2d.size * x2d.dtype.itemsize
                        + w_pad.size * w_pad.dtype.itemsize
                        + b_pad.size * b_pad.dtype.itemsize
                        + M * C * jnp.dtype(out_dtype).itemsize),
    )

    out = pl.pallas_call(
        functools.partial(_cls_softmax_kernel, compute_dtype=compute_dtype),
        out_shape=jax.ShapeDtypeStruct((M, C), out_dtype),
        grid_spec=pltpu.PrefetchScalarGridSpec(
            num_scalar_prefetch=0,
            grid=grid,
            in_specs=[
                pl.BlockSpec((row_tile, H), lambda i: (i, 0)),   # hidden rows (stream)
                pl.BlockSpec((H, LANES), lambda i: (0, 0)),      # resident diff weight
                pl.BlockSpec((1, LANES), lambda i: (0, 0)),      # resident diff bias
            ],
            out_specs=pl.BlockSpec((row_tile, C), lambda i: (i, 0)),
        ),
        compiler_params=pltpu.CompilerParams(
            dimension_semantics=("parallel",),
            vmem_limit_bytes=28 * 1024 * 1024,
        ),
        cost_estimate=cost,
    )(x2d, w_pad, b_pad)

    return out.reshape(B, S, C)


def cls_softmax(hidden_state, weight, bias, *, row_tile=None,
                compute_dtype=jnp.bfloat16):
    """hidden_state: [B, S, H]; weight: [C, H]; bias: [C] -> softmax probs [B, S, C]."""
    B, S, H = hidden_state.shape
    assert weight.shape == (NUM_CLASSES, H) and bias.shape == (NUM_CLASSES,)
    if row_tile is None:
        row_tile = _pick_row_tile(B * S)
    return _cls_softmax_jit(hidden_state, weight, bias, row_tile, compute_dtype)


if __name__ == "__main__":
    key = jax.random.PRNGKey(0)
    k_x, k_w, k_b = jax.random.split(key, 3)

    B, S = 2, 8  # small batch / sequence; hidden fixed at 768 by the module
    hidden_state = jax.random.normal(k_x, (B, S, HIDDEN), dtype=jnp.float32)

    # Deterministic "cls" parameters (PyTorch nn.Linear-like init scale).
    bound = 1.0 / (HIDDEN ** 0.5)
    cls_w = jax.random.uniform(k_w, (NUM_CLASSES, HIDDEN), jnp.float32,
                               minval=-bound, maxval=bound)
    cls_b = jax.random.uniform(k_b, (NUM_CLASSES,), jnp.float32,
                               minval=-bound, maxval=bound)

    # Pure-JAX reference.
    ref = jax.nn.softmax(
        jnp.einsum("bsh,ch->bsc", hidden_state, cls_w) + cls_b, axis=-1)

    # Default bf16-MXU fast path (loosened tolerance per bf16 input rounding).
    probs = cls_softmax(hidden_state, cls_w, cls_b)
    jax.block_until_ready(probs)
    assert probs.shape == (B, S, NUM_CLASSES)
    assert jnp.allclose(probs, ref, atol=5e-3, rtol=0)
    assert jnp.allclose(jnp.sum(probs, axis=-1), 1.0, atol=1e-5)

    # f32 validation path (tight tolerance, exact module semantics).
    probs_f32 = cls_softmax(hidden_state, cls_w, cls_b, compute_dtype=jnp.float32)
    jax.block_until_ready(probs_f32)
    assert jnp.allclose(probs_f32, ref, atol=1e-5, rtol=1e-5)
    assert jnp.allclose(jnp.sum(probs_f32, axis=-1), 1.0, atol=1e-6)

    print("KERNEL_OK")
</pallas_src>

<mosaic_0001>
module attributes {stable_mosaic.version = 11 : i64} {
  func.func @_cls_softmax_kernel(%arg0: i32, %arg1: memref<16x768xf32, #tpu.memory_space<vmem>>, %arg2: memref<768x128xbf16, #tpu.memory_space<vmem>>, %arg3: memref<1x128xf32, #tpu.memory_space<vmem>>, %arg4: memref<16x2xf32, #tpu.memory_space<vmem>>) attributes {dimension_semantics = [#tpu.dimension_semantics<parallel>], iteration_bounds = array<i64: 1>, scalar_prefetch = 0 : i64, scratch_operands = 0 : i64, tpu.core_type = #tpu.core_type<tc>, window_params = [{transform_indices = @transform_0, window_bounds = array<i64: 16, 768>}, {pipeline_mode = #tpu.pipeline_mode<synchronous>, transform_indices = @transform_1, window_bounds = array<i64: 768, 128>}, {pipeline_mode = #tpu.pipeline_mode<synchronous>, transform_indices = @transform_2, window_bounds = array<i64: 1, 128>}, {transform_indices = @transform_3, window_bounds = array<i64: 16, 2>}]} {
    %c0 = arith.constant 0 : index
    %c0_0 = arith.constant 0 : index
    %0 = vector.load %arg1[%c0, %c0_0] : memref<16x768xf32, #tpu.memory_space<vmem>>, vector<16x768xf32>
    %1 = arith.truncf %0 : vector<16x768xf32> to vector<16x768xbf16>
    %c0_1 = arith.constant 0 : index
    %c0_2 = arith.constant 0 : index
    %2 = vector.load %arg2[%c0_1, %c0_2] : memref<768x128xbf16, #tpu.memory_space<vmem>>, vector<768x128xbf16>
    %cst = arith.constant dense<0.000000e+00> : vector<16x128xf32>
    %3 = tpu.matmul %1, %2, %cst {dimension_numbers = #tpu.dot_dimension_numbers<[1], [0], [0], [1], [0, 0, 1, 1], [], []>} : vector<16x768xbf16>, vector<768x128xbf16>, vector<16x128xf32> -> vector<16x128xf32>
    %c0_3 = arith.constant 0 : index
    %c0_4 = arith.constant 0 : index
    %4 = vector.load %arg3[%c0_3, %c0_4] : memref<1x128xf32, #tpu.memory_space<vmem>>, vector<1x128xf32>
    %5 = vector.broadcast %4 : vector<1x128xf32> to vector<16x128xf32>
    %6 = arith.addf %3, %5 : vector<16x128xf32>
    %7 = vector.extract_strided_slice %6 {offsets = [0, 0], sizes = [16, 2], strides = [1, 1]} : vector<16x128xf32> to vector<16x2xf32>
    %8 = arith.negf %7 : vector<16x2xf32>
    %9 = math.exp %8 : vector<16x2xf32>
    %cst_5 = arith.constant 1.000000e+00 : f32
    %10 = vector.broadcast %cst_5 : f32 to vector<16x2xf32>
    %11 = arith.addf %10, %9 : vector<16x2xf32>
    %12 = arith.divf %10, %11 : vector<16x2xf32>
    %c0_6 = arith.constant 0 : index
    %c0_7 = arith.constant 0 : index
    %13 = vector.load %arg4[%c0_6, %c0_7] : memref<16x2xf32, #tpu.memory_space<vmem>>, vector<16x2xf32>
    tpu.vector_store %arg4[%c0_6, %c0_7], %12 {strides = array<i32>} : memref<16x2xf32, #tpu.memory_space<vmem>>, vector<16x2xf32>,
    return
  }
  func.func @transform_0(%arg0: i32) -> (i32, i32) {
    %c0_i32 = arith.constant 0 : i32
    %c0_i32_0 = arith.constant 0 : i32
    return %arg0, %c0_i32 : i32, i32
  }
  func.func @transform_1(%arg0: i32) -> (i32, i32) {
    %c0_i32 = arith.constant 0 : i32
    %c0_i32_0 = arith.constant 0 : i32
    %c0_i32_1 = arith.constant 0 : i32
    return %c0_i32, %c0_i32_0 : i32, i32
  }
  func.func @transform_2(%arg0: i32) -> (i32, i32) {
    %c0_i32 = arith.constant 0 : i32
    %c0_i32_0 = arith.constant 0 : i32
    %c0_i32_1 = arith.constant 0 : i32
    return %c0_i32, %c0_i32_0 : i32, i32
  }
  func.func @transform_3(%arg0: i32) -> (i32, i32) {
    %c0_i32 = arith.constant 0 : i32
    %c0_i32_0 = arith.constant 0 : i32
    return %arg0, %c0_i32 : i32, i32
  }
}

</mosaic_0001>

<llo_original>
// kernel: _cls_softmax_jit.1
$region0: #{_cls_softmax_jit.1}
  #allocation0 [shape = 'u32[]', space=smem, size = 0x4, offset = 0x4, fixed_abs, tag = 'smem constant byte address 0x4 - core index']
  #allocation1 [shape = 'u32[72,128]{1,0:T(1,128)}', space=vmem, size = 0x9000, scoped, tag = 'internal scratch']
  %s0 = inlined_call_operand.vmem [shape: f32[16,768], index: 0, kind: input, shape index: {}]
  %s1 = inlined_call_operand.vmem [shape: bf16[768,128], index: 1, kind: input, shape index: {}]
  %s2 = inlined_call_operand.vmem [shape: f32[1,128], index: 2, kind: input, shape index: {}]
  %s3 = inlined_call_operand.vmem [shape: f32[16,2], index: 3, kind: output, shape index: {}]
  %s4 = sld [smem:[#allocation0]]
  $region22: #{_cls_softmax_jit.1} parent=0
    _
  %s6 = ssub.s32 1, %s4
  %s7 = scalar_select 0, %s6, %s4
  // Predicated region
  $region2: #{_cls_softmax_jit.1} parent=0 // pred_check
    _
  $region3: #{_cls_softmax_jit.1} parent=0 // pred_check_branch
    %9 = sbr.rel (0) target = $region5
  $region4: #{_cls_softmax_jit.1} parent=0 // pred_region
    _
  $region5: #{_cls_softmax_jit.1} parent=0 // pred_fallthru
    _
  // Predicated region
  $region6: #{_cls_softmax_jit.1} parent=0 // pred_check
    _
  $region7: #{_cls_softmax_jit.1} parent=0 // pred_check_branch
    %11 = sbr.rel (0) target = $region9
  $region8: #{_cls_softmax_jit.1} parent=0 // pred_region
    _
  $region9: #{_cls_softmax_jit.1} parent=0 // pred_fallthru
    _
  // Predicated region
  $region10: #{_cls_softmax_jit.1} parent=0 // pred_check
    _
  $region11: #{_cls_softmax_jit.1} parent=0 // pred_check_branch
    %13 = sbr.rel (0) target = $region13
  $region12: #{_cls_softmax_jit.1} parent=0 // pred_region
    _
  $region13: #{_cls_softmax_jit.1} parent=0 // pred_fallthru
    _
  %v14 = vld [vmem:[%s0] sm:$0xff]
  %v15 = vld [vmem:[%s0 + $0x8] sm:$0xff]
  %v16 = vld [vmem:[%s0 + $0x10] sm:$0xff]
  %v17 = vld [vmem:[%s0 + $0x18] sm:$0xff]
  %v18 = vld [vmem:[%s0 + $0x20] sm:$0xff]
  %v19 = vld [vmem:[%s0 + $0x28] sm:$0xff]
  %v20 = vld [vmem:[%s0 + $0x30] sm:$0xff]
  %v21 = vld [vmem:[%s0 + $0x38] sm:$0xff]
  %v22 = vld [vmem:[%s0 + $0x40] sm:$0xff]
  %v23 = vld [vmem:[%s0 + $0x48] sm:$0xff]
  %v24 = vld [vmem:[%s0 + $0x50] sm:$0xff]
  %v25 = vld [vmem:[%s0 + $0x58] sm:$0xff]
  %v26 = vpack.c.bf16 %v20, %v14
  %v27 = vpack.c.bf16 %v21, %v15
  %v28 = vpack.c.bf16 %v22, %v16
  %v29 = vpack.c.bf16 %v23, %v17
  %v30 = vpack.c.bf16 %v24, %v18
  %v31 = vpack.c.bf16 %v25, %v19
  %v32 = vld [vmem:[%s1] sm:$0xf]
  %v33 = vld [vmem:[%s1 + $0x4] sm:$0xf]
  %v34 = vld [vmem:[%s1 + $0x8] sm:$0xf]
  %v35 = vld [vmem:[%s1 + $0xc] sm:$0xf]
  %v36 = vld [vmem:[%s1 + $0x10] sm:$0xf]
  %v37 = vld [vmem:[%s1 + $0x14] sm:$0xf]
  %v38 = vld [vmem:[%s1 + $0x18] sm:$0xf]
  %v39 = vld [vmem:[%s1 + $0x1c] sm:$0xf]
  %v40 = vld [vmem:[%s1 + $0x20] sm:$0xf]
  %v41 = vld [vmem:[%s1 + $0x24] sm:$0xf]
  %v42 = vld [vmem:[%s1 + $0x28] sm:$0xf]
  %v43 = vld [vmem:[%s1 + $0x2c] sm:$0xf]
  %v44 = vld [vmem:[%s1 + $0x30] sm:$0xf]
  %v45 = vld [vmem:[%s1 + $0x34] sm:$0xf]
  %v46 = vld [vmem:[%s1 + $0x38] sm:$0xf]
  %v47 = vld [vmem:[%s1 + $0x3c] sm:$0xf]
  %v48 = vld [vmem:[%s1 + $0x40] sm:$0xf]
  %v49 = vld [vmem:[%s1 + $0x44] sm:$0xf]
  %v50 = vld [vmem:[%s1 + $0x48] sm:$0xf]
  %v51 = vld [vmem:[%s1 + $0x4c] sm:$0xf]
  %v52 = vld [vmem:[%s1 + $0x50] sm:$0xf]
  %v53 = vld [vmem:[%s1 + $0x54] sm:$0xf]
  %v54 = vld [vmem:[%s1 + $0x58] sm:$0xf]
  %v55 = vld [vmem:[%s1 + $0x5c] sm:$0xf]
  %v56 = vld [vmem:[%s1 + $0x60] sm:$0xf]
  %v57 = vld [vmem:[%s1 + $0x64] sm:$0xf]
  %v58 = vld [vmem:[%s1 + $0x68] sm:$0xf]
  %v59 = vld [vmem:[%s1 + $0x6c] sm:$0xf]
  %v60 = vld [vmem:[%s1 + $0x70] sm:$0xf]
  %v61 = vld [vmem:[%s1 + $0x74] sm:$0xf]
  %v62 = vld [vmem:[%s1 + $0x78] sm:$0xf]
  %v63 = vld [vmem:[%s1 + $0x7c] sm:$0xf]
  %v64 = vld [vmem:[%s1 + $0x80] sm:$0xf]
  %v65 = vld [vmem:[%s1 + $0x84] sm:$0xf]
  %v66 = vld [vmem:[%s1 + $0x88] sm:$0xf]
  %v67 = vld [vmem:[%s1 + $0x8c] sm:$0xf]
  %v68 = vld [vmem:[%s1 + $0x90] sm:$0xf]
  %v69 = vld [vmem:[%s1 + $0x94] sm:$0xf]
  %v70 = vld [vmem:[%s1 + $0x98] sm:$0xf]
  %v71 = vld [vmem:[%s1 + $0x9c] sm:$0xf]
  %v72 = vld [vmem:[%s1 + $0xa0] sm:$0xf]
  %v73 = vld [vmem:[%s1 + $0xa4] sm:$0xf]
  %v74 = vld [vmem:[%s1 + $0xa8] sm:$0xf]
  %v75 = vld [vmem:[%s1 + $0xac] sm:$0xf]
  %v76 = vld [vmem:[%s1 + $0xb0] sm:$0xf]
  %v77 = vld [vmem:[%s1 + $0xb4] sm:$0xf]
  %v78 = vld [vmem:[%s1 + $0xb8] sm:$0xf]
  %v79 = vld [vmem:[%s1 + $0xbc] sm:$0xf]
  %v80 = vld [vmem:[%s1 + $0xc0] sm:$0xf]
  %v81 = vld [vmem:[%s1 + $0xc4] sm:$0xf]
  %v82 = vld [vmem:[%s1 + $0xc8] sm:$0xf]
  %v83 = vld [vmem:[%s1 + $0xcc] sm:$0xf]
  %v84 = vld [vmem:[%s1 + $0xd0] sm:$0xf]
  %v85 = vld [vmem:[%s1 + $0xd4] sm:$0xf]
  %v86 = vld [vmem:[%s1 + $0xd8] sm:$0xf]
  %v87 = vld [vmem:[%s1 + $0xdc] sm:$0xf]
  %v88 = vld [vmem:[%s1 + $0xe0] sm:$0xf]
  %v89 = vld [vmem:[%s1 + $0xe4] sm:$0xf]
  %v90 = vld [vmem:[%s1 + $0xe8] sm:$0xf]
  %v91 = vld [vmem:[%s1 + $0xec] sm:$0xf]
  %v92 = vld [vmem:[%s1 + $0xf0] sm:$0xf]
  %v93 = vld [vmem:[%s1 + $0xf4] sm:$0xf]
  %v94 = vld [vmem:[%s1 + $0xf8] sm:$0xf]
  %v95 = vld [vmem:[%s1 + $0xfc] sm:$0xf]
  %v96 = vld [vmem:[%s1 + $0x100] sm:$0xf]
  %v97 = vld [vmem:[%s1 + $0x104] sm:$0xf]
  %v98 = vld [vmem:[%s1 + $0x108] sm:$0xf]
  %v99 = vld [vmem:[%s1 + $0x10c] sm:$0xf]
  %v100 = vld [vmem:[%s1 + $0x110] sm:$0xf]
  %v101 = vld [vmem:[%s1 + $0x114] sm:$0xf]
  %v102 = vld [vmem:[%s1 + $0x118] sm:$0xf]
  %v103 = vld [vmem:[%s1 + $0x11c] sm:$0xf]
  %v104 = vld [vmem:[%s1 + $0x120] sm:$0xf]
  %v105 = vld [vmem:[%s1 + $0x124] sm:$0xf]
  %v106 = vld [vmem:[%s1 + $0x128] sm:$0xf]
  %v107 = vld [vmem:[%s1 + $0x12c] sm:$0xf]
  %v108 = vld [vmem:[%s1 + $0x130] sm:$0xf]
  %v109 = vld [vmem:[%s1 + $0x134] sm:$0xf]
  %v110 = vld [vmem:[%s1 + $0x138] sm:$0xf]
  %v111 = vld [vmem:[%s1 + $0x13c] sm:$0xf]
  %v112 = vld [vmem:[%s1 + $0x140] sm:$0xf]
  %v113 = vld [vmem:[%s1 + $0x144] sm:$0xf]
  %v114 = vld [vmem:[%s1 + $0x148] sm:$0xf]
  %v115 = vld [vmem:[%s1 + $0x14c] sm:$0xf]
  %v116 = vld [vmem:[%s1 + $0x150] sm:$0xf]
  %v117 = vld [vmem:[%s1 + $0x154] sm:$0xf]
  %v118 = vld [vmem:[%s1 + $0x158] sm:$0xf]
  %v119 = vld [vmem:[%s1 + $0x15c] sm:$0xf]
  %v120 = vld [vmem:[%s1 + $0x160] sm:$0xf]
  %v121 = vld [vmem:[%s1 + $0x164] sm:$0xf]
  %v122 = vld [vmem:[%s1 + $0x168] sm:$0xf]
  %v123 = vld [vmem:[%s1 + $0x16c] sm:$0xf]
  %v124 = vld [vmem:[%s1 + $0x170] sm:$0xf]
  %v125 = vld [vmem:[%s1 + $0x174] sm:$0xf]
  %v126 = vld [vmem:[%s1 + $0x178] sm:$0xf]
  %v127 = vld [vmem:[%s1 + $0x17c] sm:$0xf]
  %v128 = vld [vmem:[%s2] sm:$0x1]
  %v130 = vperm.slane %v128, 0
  %v228 = vunpack.c.l.b16 %v32
  %v229 = vunpack.c.l.b16 %v33
  %v230 = vunpack.c.l.b16 %v34
  %v231 = vunpack.c.l.b16 %v35
  %v232 = vunpack.c.l.b16 %v36
  %v233 = vunpack.c.l.b16 %v37
  %v234 = vunpack.c.l.b16 %v38
  %v235 = vunpack.c.l.b16 %v39
  %v236 = vunpack.c.l.b16 %v40
  %v237 = vunpack.c.l.b16 %v41
  %v238 = vunpack.c.l.b16 %v42
  %v239 = vunpack.c.l.b16 %v43
  %v240 = vunpack.c.l.b16 %v44
  %v241 = vunpack.c.l.b16 %v45
  %v242 = vunpack.c.l.b16 %v46
  %v243 = vunpack.c.l.b16 %v47
  %v244 = vunpack.c.l.b16 %v48
  %v245 = vunpack.c.l.b16 %v49
  %v246 = vunpack.c.l.b16 %v50
  %v247 = vunpack.c.l.b16 %v51
  %v248 = vunpack.c.l.b16 %v52
  %v249 = vunpack.c.l.b16 %v53
  %v250 = vunpack.c.l.b16 %v54
  %v251 = vunpack.c.l.b16 %v55
  %v252 = vunpack.c.l.b16 %v56
  %v253 = vunpack.c.l.b16 %v57
  %v254 = vunpack.c.l.b16 %v58
  %v255 = vunpack.c.l.b16 %v59
  %v256 = vunpack.c.l.b16 %v60
  %v257 = vunpack.c.l.b16 %v61
  %v258 = vunpack.c.l.b16 %v62
  %v259 = vunpack.c.l.b16 %v63
  %v260 = vunpack.c.l.b16 %v64
  %v261 = vunpack.c.l.b16 %v65
  %v262 = vunpack.c.l.b16 %v66
  %v263 = vunpack.c.l.b16 %v67
  %v264 = vunpack.c.l.b16 %v68
  %v265 = vunpack.c.l.b16 %v69
  %v266 = vunpack.c.l.b16 %v70
  %v267 = vunpack.c.l.b16 %v71
  %v268 = vunpack.c.l.b16 %v72
  %v269 = vunpack.c.l.b16 %v73
  %v270 = vunpack.c.l.b16 %v74
  %v271 = vunpack.c.l.b16 %v75
  %v272 = vunpack.c.l.b16 %v76
  %v273 = vunpack.c.l.b16 %v77
  %v274 = vunpack.c.l.b16 %v78
  %v275 = vunpack.c.l.b16 %v79
  %v276 = vunpack.c.l.b16 %v80
  %v277 = vunpack.c.l.b16 %v81
  %v278 = vunpack.c.l.b16 %v82
  %v279 = vunpack.c.l.b16 %v83
  %v280 = vunpack.c.l.b16 %v84
  %v281 = vunpack.c.l.b16 %v85
  %v282 = vunpack.c.l.b16 %v86
  %v283 = vunpack.c.l.b16 %v87
  %v284 = vunpack.c.l.b16 %v88
  %v285 = vunpack.c.l.b16 %v89
  %v286 = vunpack.c.l.b16 %v90
  %v287 = vunpack.c.l.b16 %v91
  %v288 = vunpack.c.l.b16 %v92
  %v289 = vunpack.c.l.b16 %v93
  %v290 = vunpack.c.l.b16 %v94
  %v291 = vunpack.c.l.b16 %v95
  %v292 = vunpack.c.l.b16 %v96
  %v293 = vunpack.c.l.b16 %v97
  %v294 = vunpack.c.l.b16 %v98
  %v295 = vunpack.c.l.b16 %v99
  %v296 = vunpack.c.l.b16 %v100
  %v297 = vunpack.c.l.b16 %v101
  %v298 = vunpack.c.l.b16 %v102
  %v299 = vunpack.c.l.b16 %v103
  %v300 = vunpack.c.l.b16 %v104
  %v301 = vunpack.c.l.b16 %v105
  %v302 = vunpack.c.l.b16 %v106
  %v303 = vunpack.c.l.b16 %v107
  %v304 = vunpack.c.l.b16 %v108
  %v305 = vunpack.c.l.b16 %v109
  %v306 = vunpack.c.l.b16 %v110
  %v307 = vunpack.c.l.b16 %v111
  %v308 = vunpack.c.l.b16 %v112
  %v309 = vunpack.c.l.b16 %v113
  %v310 = vunpack.c.l.b16 %v114
  %v311 = vunpack.c.l.b16 %v115
  %v312 = vunpack.c.l.b16 %v116
  %v313 = vunpack.c.l.b16 %v117
  %v314 = vunpack.c.l.b16 %v118
  %v315 = vunpack.c.l.b16 %v119
  %v316 = vunpack.c.l.b16 %v120
  %v317 = vunpack.c.l.b16 %v121
  %v318 = vunpack.c.l.b16 %v122
  %v319 = vunpack.c.l.b16 %v123
  %v320 = vunpack.c.l.b16 %v124
  %v321 = vunpack.c.l.b16 %v125
  %v322 = vunpack.c.l.b16 %v126
  %v323 = vunpack.c.l.b16 %v127
  %v324 = vpack.c.b16 %v229, %v228
  %v325 = vpack.c.b16 %v231, %v230
  %v326 = vpack.c.b16 %v233, %v232
  %v327 = vpack.c.b16 %v235, %v234
  %v328 = vpack.c.b16 %v237, %v236
  %v329 = vpack.c.b16 %v239, %v238
  %v330 = vpack.c.b16 %v241, %v240
  %v331 = vpack.c.b16 %v243, %v242
  %v332 = vpack.c.b16 %v245, %v244
  %v333 = vpack.c.b16 %v247, %v246
  %v334 = vpack.c.b16 %v249, %v248
  %v335 = vpack.c.b16 %v251, %v250
  %v336 = vpack.c.b16 %v253, %v252
  %v337 = vpack.c.b16 %v255, %v254
  %v338 = vpack.c.b16 %v257, %v256
  %v339 = vpack.c.b16 %v259, %v258
  %v340 = vpack.c.b16 %v261, %v260
  %v341 = vpack.c.b16 %v263, %v262
  %v342 = vpack.c.b16 %v265, %v264
  %v343 = vpack.c.b16 %v267, %v266
  %v344 = vpack.c.b16 %v269, %v268
  %v345 = vpack.c.b16 %v271, %v270
  %v346 = vpack.c.b16 %v273, %v272
  %v347 = vpack.c.b16 %v275, %v274
  %v348 = vpack.c.b16 %v277, %v276
  %v349 = vpack.c.b16 %v279, %v278
  %v350 = vpack.c.b16 %v281, %v280
  %v351 = vpack.c.b16 %v283, %v282
  %v352 = vpack.c.b16 %v285, %v284
  %v353 = vpack.c.b16 %v287, %v286
  %v354 = vpack.c.b16 %v289, %v288
  %v355 = vpack.c.b16 %v291, %v290
  %v356 = vpack.c.b16 %v293, %v292
  %v357 = vpack.c.b16 %v295, %v294
  %v358 = vpack.c.b16 %v297, %v296
  %v359 = vpack.c.b16 %v299, %v298
  %v360 = vpack.c.b16 %v301, %v300
  %v361 = vpack.c.b16 %v303, %v302
  %v362 = vpack.c.b16 %v305, %v304
  %v363 = vpack.c.b16 %v307, %v306
  %v364 = vpack.c.b16 %v309, %v308
  %v365 = vpack.c.b16 %v311, %v310
  %v366 = vpack.c.b16 %v313, %v312
  %v367 = vpack.c.b16 %v315, %v314
  %v368 = vpack.c.b16 %v317, %v316
  %v369 = vpack.c.b16 %v319, %v318
  %v370 = vpack.c.b16 %v321, %v320
  %v371 = vpack.c.b16 %v323, %v322
  %420 = vmatpush.bf16.msra.mxu0 %v331
  %421 = vmatpush.bf16.msra.mxu0 %v330
  %422 = vmatpush.bf16.msra.mxu0 %v329
  %423 = vmatpush.bf16.msra.mxu0 %v328
  %424 = vmatpush.bf16.msra.mxu0 %v327
  %425 = vmatpush.bf16.msra.mxu0 %v326
  %426 = vmatpush.bf16.msra.mxu0 %v325
  %427 = vmatpush.bf16.msra.mxu0 %v324
  %428 = vmatmul.bf16.gmra.mxu0 %v26
  %v429 = vpop.f32.mrf.mxu0
  %v430 = vadd.f32 %v130, %v429
  %v431 = vpop.f32.mrf.mxu0
  %v432 = vadd.f32 %v130, %v431
  %433 = vdwg.mxu0
  %434 = vmatpush.bf16.msra.mxu0 %v339
  %435 = vmatpush.bf16.msra.mxu0 %v338
  %436 = vmatpush.bf16.msra.mxu0 %v337
  %437 = vmatpush.bf16.msra.mxu0 %v336
  %438 = vmatpush.bf16.msra.mxu0 %v335
  %439 = vmatpush.bf16.msra.mxu0 %v334
  %440 = vmatpush.bf16.msra.mxu0 %v333
  %441 = vmatpush.bf16.msra.mxu0 %v332
  %442 = vmatmul.bf16.gmra.mxu0 %v27
  %v443 = vpop.f32.mrf.mxu0
  %v444 = vadd.f32 %v430, %v443
  %v445 = vpop.f32.mrf.mxu0
  %v446 = vadd.f32 %v432, %v445
  %447 = vdwg.mxu0
  %448 = vmatpush.bf16.msra.mxu0 %v347
  %449 = vmatpush.bf16.msra.mxu0 %v346
  %450 = vmatpush.bf16.msra.mxu0 %v345
  %451 = vmatpush.bf16.msra.mxu0 %v344
  %452 = vmatpush.bf16.msra.mxu0 %v343
  %453 = vmatpush.bf16.msra.mxu0 %v342
  %454 = vmatpush.bf16.msra.mxu0 %v341
  %455 = vmatpush.bf16.msra.mxu0 %v340
  %456 = vmatmul.bf16.gmra.mxu0 %v28
  %v457 = vpop.f32.mrf.mxu0
  %v458 = vadd.f32 %v444, %v457
  %v459 = vpop.f32.mrf.mxu0
  %v460 = vadd.f32 %v446, %v459
  %461 = vdwg.mxu0
  %462 = vmatpush.bf16.msra.mxu0 %v355
  %463 = vmatpush.bf16.msra.mxu0 %v354
  %464 = vmatpush.bf16.msra.mxu0 %v353
  %465 = vmatpush.bf16.msra.mxu0 %v352
  %466 = vmatpush.bf16.msra.mxu0 %v351
  %467 = vmatpush.bf16.msra.mxu0 %v350
  %468 = vmatpush.bf16.msra.mxu0 %v349
  %469 = vmatpush.bf16.msra.mxu0 %v348
  %470 = vmatmul.bf16.gmra.mxu0 %v29
  %v471 = vpop.f32.mrf.mxu0
  %v472 = vadd.f32 %v458, %v471
  %v473 = vpop.f32.mrf.mxu0
  %v474 = vadd.f32 %v460, %v473
  %475 = vdwg.mxu0
  %476 = vmatpush.bf16.msra.mxu0 %v363
  %477 = vmatpush.bf16.msra.mxu0 %v362
  %478 = vmatpush.bf16.msra.mxu0 %v361
  %479 = vmatpush.bf16.msra.mxu0 %v360
  %480 = vmatpush.bf16.msra.mxu0 %v359
  %481 = vmatpush.bf16.msra.mxu0 %v358
  %482 = vmatpush.bf16.msra.mxu0 %v357
  %483 = vmatpush.bf16.msra.mxu0 %v356
  %484 = vmatmul.bf16.gmra.mxu0 %v30
  %v485 = vpop.f32.mrf.mxu0
  %v486 = vadd.f32 %v472, %v485
  %v487 = vpop.f32.mrf.mxu0
  %v488 = vadd.f32 %v474, %v487
  %489 = vdwg.mxu0
  %490 = vmatpush.bf16.msra.mxu0 %v371
  %491 = vmatpush.bf16.msra.mxu0 %v370
  %492 = vmatpush.bf16.msra.mxu0 %v369
  %493 = vmatpush.bf16.msra.mxu0 %v368
  %494 = vmatpush.bf16.msra.mxu0 %v367
  %495 = vmatpush.bf16.msra.mxu0 %v366
  %496 = vmatpush.bf16.msra.mxu0 %v365
  %497 = vmatpush.bf16.msra.mxu0 %v364
  %498 = vmatmul.bf16.gmra.mxu0 %v31
  %v499 = vpop.f32.mrf.mxu0
  %v500 = vadd.f32 %v486, %v499
  %v501 = vpop.f32.mrf.mxu0
  %v502 = vadd.f32 %v488, %v501
  %503 = vdwg.mxu0
  %v504 = vxor.u32 %v500, 2147483648
  %v505 = vxor.u32 %v502, 2147483648
  %v506 = vmul.f32 %v504, 1.442695
  %v507 = vpow.pop %v506
  %v508 = vmul.f32 %v505, 1.442695
  %v509 = vpow.pop %v508
  %v510 = vadd.f32 %v507, 1.0
  %v511 = vadd.f32 %v509, 1.0
  %v512 = vrcp.pop %v510
  %v513 = vmul.f32 %v510, %v512
  %v514 = vsub.f32 1.0, %v513
  %v515 = vmul.f32 %v512, %v514
  %v516 = vadd.f32 %v512, %v515
  %vm517 = vweird.f32 %v510
  %vm518 = vweird.f32 %v512
  %vm519 = vmor %vm517, %vm518
  %v520 = vsel %vm519, %v512, %v516
  %v521 = vand.u32 2147483647, %v510
  %vm522 = vcmp.eq.f32.partialorder %v521, 8.507059e+37
  %v523 = vand.u32 %v510, 2147483648
  %v524 = vor.u32 1.1754944e-38, %v523
  %v525 = vsel %vm522, %v524, %v520
  %v526 = vmul.f32 1.0, %v525
  %v527 = vrcp.pop %v511
  %v528 = vmul.f32 %v511, %v527
  %v529 = vsub.f32 1.0, %v528
  %v530 = vmul.f32 %v527, %v529
  %v531 = vadd.f32 %v527, %v530
  %vm532 = vweird.f32 %v511
  %vm533 = vweird.f32 %v527
  %vm534 = vmor %vm532, %vm533
  %v535 = vsel %vm534, %v527, %v531
  %v536 = vand.u32 2147483647, %v511
  %vm537 = vcmp.eq.f32.partialorder %v536, 8.507059e+37
  %v538 = vand.u32 %v511, 2147483648
  %v539 = vor.u32 1.1754944e-38, %v538
  %v540 = vsel %vm537, %v539, %v535
  %v541 = vmul.f32 1.0, %v540
  %vm542 = vcmask 15360
  %543 = vst.msk [vmem:[%s3] sm:$0xff] %vm542, %v526
  %544 = vst.msk [vmem:[%s3 + $0x8] sm:$0xff] %vm542, %v541
  // Predicated region
  $region14: #{_cls_softmax_jit.1} parent=0 // pred_check
    _
  $region15: #{_cls_softmax_jit.1} parent=0 // pred_check_branch
    %546 = sbr.rel (0) target = $region17
  $region16: #{_cls_softmax_jit.1} parent=0 // pred_region
    _
  $region17: #{_cls_softmax_jit.1} parent=0 // pred_fallthru
    _
  // Predicated region
  $region18: #{_cls_softmax_jit.1} parent=0 // pred_check
    _
  $region19: #{_cls_softmax_jit.1} parent=0 // pred_check_branch
    %548 = sbr.rel (0) target = $region21
  $region20: #{_cls_softmax_jit.1} parent=0 // pred_region
    _
  $region21: #{_cls_softmax_jit.1} parent=0 // pred_fallthru
    _

</llo_original>
